<compile_context>
chip_gen: v5e
topology: v5e:2x2
jax: 0.10.0
libtpu: 0.0.40
codegen_flags: <defaults>
</compile_context>

<pallas_src>
import math

import jax
import jax.numpy as jnp
from jax.experimental import pallas as pl
from jax.experimental.pallas import tpu as pltpu

_GELU_C = math.sqrt(2.0 / math.pi)


def _gelu_new(x):
    # transformers "gelu_new": 0.5*x*(1+tanh(sqrt(2/pi)*(x+0.044715*x^3)))
    # written with minimal VALU ops: x + 0.044715*x^3 == x*(1 + 0.044715*x^2)
    u = x * (1.0 + 0.044715 * (x * x))
    return 0.5 * x * (1.0 + jnp.tanh(_GELU_C * u))


def _mlp_kernel(x_ref, w1_ref, w2_ref, o_ref, acc_ref):
    # x_ref:  [tm, isize]        activation tile (native dtype)
    # w1_ref: [ic, isize]        chunk of W_fc   (PyTorch [out, in] layout)
    # w2_ref: [osize, ic]        chunk of W_proj (PyTorch [out, in] layout)
    # o_ref:  [tm, osize]        output tile (resident across the k axis)
    # acc_ref:[tm, osize] f32    VMEM accumulator scratch
    k = pl.program_id(1)

    @pl.when(k == 0)
    def _():
        acc_ref[...] = jnp.zeros_like(acc_ref)

    # x @ W_fc^T  -> [tm, ic], f32 accumulation on the MXU, operands native dtype
    h = jax.lax.dot_general(
        x_ref[...], w1_ref[...],
        dimension_numbers=(((1,), (1,)), ((), ())),
        preferred_element_type=jnp.float32)

    h = _gelu_new(h)                       # f32 on VPU/EUP (hidden under MXU)
    h = h.astype(w2_ref.dtype)             # back to matmul dtype (no-op for f32)

    # h @ W_proj^T -> [tm, osize], accumulate over intermediate chunks
    acc_ref[...] += jax.lax.dot_general(
        h, w2_ref[...],
        dimension_numbers=(((1,), (1,)), ((), ())),
        preferred_element_type=jnp.float32)

    @pl.when(k == pl.num_programs(1) - 1)
    def _():
        o_ref[...] = acc_ref[...].astype(o_ref.dtype)


def _round_up(v, m):
    return (v + m - 1) // m * m


def mlp_pallas(x, w_fc, w_proj, *, tm_max=256, inter_chunk_max=512):
    """x: [..., isize]; w_fc: [inter, isize]; w_proj: [osize, inter]
    (PyTorch nn.Linear weight layout, used as-is). Returns [..., osize]."""
    orig_shape = x.shape
    isize = orig_shape[-1]
    inter, isize_w = w_fc.shape
    osize, inter_w = w_proj.shape
    assert isize_w == isize and inter_w == inter

    x2d = x.reshape(-1, isize)
    M = x2d.shape[0]

    # Row-tile: multiple of the sublane pack (8 for 4-byte, 16 for 2-byte dtypes),
    # as large as useful up to tm_max; pad M so every tile is full.
    sub = 8 if x2d.dtype.itemsize >= 4 else 16
    tm = min(_round_up(tm_max, sub), _round_up(M, sub))
    m_pad = _round_up(M, tm)
    if m_pad != M:
        x2d = jnp.pad(x2d, ((0, m_pad - M), (0, 0)))

    # Intermediate-dimension chunk: multiple of 128 lanes dividing `inter`,
    # otherwise fall back to the full (small) intermediate dim.
    ic = inter
    for cand in (inter_chunk_max, 512, 256, 128):
        if cand <= inter and inter % cand == 0:
            ic = cand
            break

    grid = (m_pad // tm, inter // ic)

    # VMEM budget: double-buffered tiles + f32 accumulator + in-flight h chunk.
    itemsize = x2d.dtype.itemsize
    blk_bytes = 2 * (tm * isize + ic * isize + osize * ic + tm * osize) * itemsize
    scratch_bytes = tm * osize * 4 + 2 * tm * ic * 4
    vmem_limit = int(min(64 * 2**20, max(32 * 2**20, 2 * (blk_bytes + scratch_bytes))))
    # TODO(synk): for osize not a multiple of 128 at real model sizes, pad the
    # output lanes to 128 for unmasked stores (small test shapes use full dims).

    cost = pl.CostEstimate(
        flops=2 * m_pad * isize * inter + 2 * m_pad * inter * osize,
        transcendentals=m_pad * inter,
        bytes_accessed=(x2d.size + w_fc.size + w_proj.size + m_pad * osize) * itemsize,
    )

    out2d = pl.pallas_call(
        _mlp_kernel,
        out_shape=jax.ShapeDtypeStruct((m_pad, osize), x.dtype),
        grid_spec=pltpu.PrefetchScalarGridSpec(
            num_scalar_prefetch=0,
            grid=grid,                                   # (M tiles, inter chunks)
            in_specs=[
                pl.BlockSpec((tm, isize), lambda i, k: (i, 0)),
                pl.BlockSpec((ic, isize), lambda i, k: (k, 0)),
                pl.BlockSpec((osize, ic), lambda i, k: (0, k)),
            ],
            out_specs=pl.BlockSpec((tm, osize), lambda i, k: (i, 0)),
            scratch_shapes=[pltpu.VMEM((tm, osize), jnp.float32)],
        ),
        compiler_params=pltpu.CompilerParams(
            dimension_semantics=("parallel", "arbitrary"),
            vmem_limit_bytes=vmem_limit,
        ),
        cost_estimate=cost,
    )(x2d, w_fc, w_proj)

    if m_pad != M:
        out2d = out2d[:M]
    return out2d.reshape(*orig_shape[:-1], osize)


if __name__ == "__main__":
    # Small shapes consistent with the module.
    batch, seq = 2, 8
    isize, intermediate_size, osize = 32, 128, 32

    key = jax.random.PRNGKey(0)
    k_x, k_w1, k_w2 = jax.random.split(key, 3)

    x = jax.random.normal(k_x, (batch, seq, isize), dtype=jnp.float32)
    # PyTorch nn.Linear weight layout: [out_features, in_features]
    w_fc = 0.02 * jax.random.normal(k_w1, (intermediate_size, isize), jnp.float32)
    w_proj = 0.02 * jax.random.normal(k_w2, (osize, intermediate_size), jnp.float32)

    out = mlp_pallas(x, w_fc, w_proj)
    out = jax.block_until_ready(out)

    # reference in plain JAX
    ref = _gelu_new(x.reshape(-1, isize) @ w_fc.T) @ w_proj.T
    ref = ref.reshape(batch, seq, osize)
    assert out.shape == ref.shape
    assert jnp.allclose(out, ref, atol=1e-4, rtol=1e-3), "mismatch vs reference"

    print("KERNEL_OK")
</pallas_src>

<mosaic_0001>
module attributes {stable_mosaic.version = 11 : i64} {
  func.func @_mlp_kernel(%arg0: i32, %arg1: i32, %arg2: memref<16x32xf32, #tpu.memory_space<vmem>>, %arg3: memref<128x32xf32, #tpu.memory_space<vmem>>, %arg4: memref<32x128xf32, #tpu.memory_space<vmem>>, %arg5: memref<16x32xf32, #tpu.memory_space<vmem>>, %arg6: memref<16x32xf32, #tpu.memory_space<vmem>>) attributes {dimension_semantics = [#tpu.dimension_semantics<parallel>, #tpu.dimension_semantics<arbitrary>], iteration_bounds = array<i64: 1, 1>, scalar_prefetch = 0 : i64, scratch_operands = 1 : i64, tpu.core_type = #tpu.core_type<tc>, window_params = [{transform_indices = @transform_0, window_bounds = array<i64: 16, 32>}, {transform_indices = @transform_1, window_bounds = array<i64: 128, 32>}, {transform_indices = @transform_2, window_bounds = array<i64: 32, 128>}, {transform_indices = @transform_3, window_bounds = array<i64: 16, 32>}]} {
    %c0_i32 = arith.constant 0 : i32
    %0 = arith.cmpi eq, %arg1, %c0_i32 : i32
    %1 = arith.extui %0 : i1 to i32
    %c0_i32_0 = arith.constant 0 : i32
    %2 = arith.cmpi ne, %1, %c0_i32_0 : i32
    scf.if %2 {
      %cst_18 = arith.constant 0.000000e+00 : f32
      %28 = vector.broadcast %cst_18 : f32 to vector<16x32xf32>
      %c0_19 = arith.constant 0 : index
      %c0_20 = arith.constant 0 : index
      %29 = vector.load %arg6[%c0_19, %c0_20] : memref<16x32xf32, #tpu.memory_space<vmem>>, vector<16x32xf32>
      tpu.vector_store %arg6[%c0_19, %c0_20], %28 {strides = array<i32>} : memref<16x32xf32, #tpu.memory_space<vmem>>, vector<16x32xf32>,
    } else {
    }
    %c0 = arith.constant 0 : index
    %c0_1 = arith.constant 0 : index
    %3 = vector.load %arg2[%c0, %c0_1] : memref<16x32xf32, #tpu.memory_space<vmem>>, vector<16x32xf32>
    %c0_2 = arith.constant 0 : index
    %c0_3 = arith.constant 0 : index
    %4 = vector.load %arg3[%c0_2, %c0_3] : memref<128x32xf32, #tpu.memory_space<vmem>>, vector<128x32xf32>
    %cst = arith.constant dense<0.000000e+00> : vector<16x128xf32>
    %5 = tpu.matmul %3, %4, %cst {dimension_numbers = #tpu.dot_dimension_numbers<[1], [1], [0], [0], [0, 0, 1, 0], [], []>} : vector<16x32xf32>, vector<128x32xf32>, vector<16x128xf32> -> vector<16x128xf32>
    %6 = arith.mulf %5, %5 : vector<16x128xf32>
    %cst_4 = arith.constant 4.471500e-02 : f32
    %7 = vector.broadcast %cst_4 : f32 to vector<16x128xf32>
    %8 = arith.mulf %7, %6 : vector<16x128xf32>
    %cst_5 = arith.constant 1.000000e+00 : f32
    %9 = vector.broadcast %cst_5 : f32 to vector<16x128xf32>
    %10 = arith.addf %9, %8 : vector<16x128xf32>
    %11 = arith.mulf %5, %10 : vector<16x128xf32>
    %cst_6 = arith.constant 5.000000e-01 : f32
    %12 = vector.broadcast %cst_6 : f32 to vector<16x128xf32>
    %13 = arith.mulf %12, %5 : vector<16x128xf32>
    %cst_7 = arith.constant 0.797884583 : f32
    %14 = vector.broadcast %cst_7 : f32 to vector<16x128xf32>
    %15 = arith.mulf %14, %11 : vector<16x128xf32>
    %16 = math.tanh %15 : vector<16x128xf32>
    %cst_8 = arith.constant 1.000000e+00 : f32
    %17 = vector.broadcast %cst_8 : f32 to vector<16x128xf32>
    %18 = arith.addf %17, %16 : vector<16x128xf32>
    %19 = arith.mulf %13, %18 : vector<16x128xf32>
    %c0_9 = arith.constant 0 : index
    %c0_10 = arith.constant 0 : index
    %20 = vector.load %arg6[%c0_9, %c0_10] : memref<16x32xf32, #tpu.memory_space<vmem>>, vector<16x32xf32>
    %c0_11 = arith.constant 0 : index
    %c0_12 = arith.constant 0 : index
    %21 = vector.load %arg4[%c0_11, %c0_12] : memref<32x128xf32, #tpu.memory_space<vmem>>, vector<32x128xf32>
    %cst_13 = arith.constant dense<0.000000e+00> : vector<16x32xf32>
    %22 = tpu.matmul %19, %21, %cst_13 {dimension_numbers = #tpu.dot_dimension_numbers<[1], [1], [0], [0], [0, 0, 1, 0], [], []>} : vector<16x128xf32>, vector<32x128xf32>, vector<16x32xf32> -> vector<16x32xf32>
    %23 = arith.addf %20, %22 : vector<16x32xf32>
    %c0_14 = arith.constant 0 : index
    %c0_15 = arith.constant 0 : index
    %24 = vector.load %arg6[%c0_14, %c0_15] : memref<16x32xf32, #tpu.memory_space<vmem>>, vector<16x32xf32>
    tpu.vector_store %arg6[%c0_14, %c0_15], %23 {strides = array<i32>} : memref<16x32xf32, #tpu.memory_space<vmem>>, vector<16x32xf32>,
    %c0_i32_16 = arith.constant 0 : i32
    %25 = arith.cmpi eq, %arg1, %c0_i32_16 : i32
    %26 = arith.extui %25 : i1 to i32
    %c0_i32_17 = arith.constant 0 : i32
    %27 = arith.cmpi ne, %26, %c0_i32_17 : i32
    scf.if %27 {
      %c0_18 = arith.constant 0 : index
      %c0_19 = arith.constant 0 : index
      %28 = vector.load %arg6[%c0_18, %c0_19] : memref<16x32xf32, #tpu.memory_space<vmem>>, vector<16x32xf32>
      %c0_20 = arith.constant 0 : index
      %c0_21 = arith.constant 0 : index
      %29 = vector.load %arg5[%c0_20, %c0_21] : memref<16x32xf32, #tpu.memory_space<vmem>>, vector<16x32xf32>
      tpu.vector_store %arg5[%c0_20, %c0_21], %28 {strides = array<i32>} : memref<16x32xf32, #tpu.memory_space<vmem>>, vector<16x32xf32>,
    } else {
    }
    return
  }
  func.func @transform_0(%arg0: i32, %arg1: i32) -> (i32, i32) {
    %c0_i32 = arith.constant 0 : i32
    %c0_i32_0 = arith.constant 0 : i32
    return %arg0, %c0_i32 : i32, i32
  }
  func.func @transform_1(%arg0: i32, %arg1: i32) -> (i32, i32) {
    %c0_i32 = arith.constant 0 : i32
    %c0_i32_0 = arith.constant 0 : i32
    return %arg1, %c0_i32 : i32, i32
  }
  func.func @transform_2(%arg0: i32, %arg1: i32) -> (i32, i32) {
    %c0_i32 = arith.constant 0 : i32
    %c0_i32_0 = arith.constant 0 : i32
    return %c0_i32, %arg1 : i32, i32
  }
  func.func @transform_3(%arg0: i32, %arg1: i32) -> (i32, i32) {
    %c0_i32 = arith.constant 0 : i32
    %c0_i32_0 = arith.constant 0 : i32
    return %arg0, %c0_i32 : i32, i32
  }
}

</mosaic_0001>

<llo_original>
// kernel: tpu_custom_call.1
$region0: #{tpu_custom_call.1}
  #allocation0 [shape = 'u32[]', space=smem, size = 0x4, offset = 0x4, fixed_abs, tag = 'smem constant byte address 0x4 - core index']
  #allocation1 [shape = 'u32[72,128]{1,0:T(1,128)}', space=vmem, size = 0x9000, scoped, tag = 'internal scratch']
  #allocation2 [shape = 'f32[16,32]{1,0:T(8,128)}', space=vmem, size = 0x2000, scoped, tag = 'scratch operand']
  %s0 = inlined_call_operand.vmem [shape: f32[16,32], index: 0, kind: input, shape index: {}]
  %s1 = inlined_call_operand.vmem [shape: f32[128,32], index: 1, kind: input, shape index: {}]
  %s2 = inlined_call_operand.vmem [shape: f32[32,128], index: 2, kind: input, shape index: {}]
  %s3 = inlined_call_operand.hbm [shape: f32[16,32], index: 3, kind: output, shape index: {}]
  %s4 = sld [smem:[#allocation0]]
  $region30: #{tpu_custom_call.1} parent=0
    _
  %s6 = ssub.s32 1, %s4
  %s7 = scalar_select 0, %s6, %s4
  $region1: #{tpu_custom_call.1} parent=0
    #allocation3 [shape = 'u8[8192]{0}', space=vmem, size = 0x2000, scoped, tag = 'output window, operand 0, single buffered']
    #allocation4 [shape = 's32[1]{0}', space=sflag, size = 0x4, scoped, tag = 'scoped memory for tpu_custom_call.1']
    %8 = vsyncpa [#allocation4], 0
    // Predicated region
    $region2: #{tpu_custom_call.1} parent=1 // pred_check
      _
    $region3: #{tpu_custom_call.1} parent=1 // pred_check_branch
      %10 = sbr.rel (0) target = $region5
    $region4: #{tpu_custom_call.1} parent=1 // pred_region
      _
    $region5: #{tpu_custom_call.1} parent=1 // pred_fallthru
      _
    // Predicated region
    $region6: #{tpu_custom_call.1} parent=1 // pred_check
      _
    $region7: #{tpu_custom_call.1} parent=1 // pred_check_branch
      %12 = sbr.rel (0) target = $region9
    $region8: #{tpu_custom_call.1} parent=1 // pred_region
      _
    $region9: #{tpu_custom_call.1} parent=1 // pred_fallthru
      _
    // Predicated region
    $region10: #{tpu_custom_call.1} parent=1 // pred_check
      _
    $region11: #{tpu_custom_call.1} parent=1 // pred_check_branch
      %14 = sbr.rel (0) target = $region13
    $region12: #{tpu_custom_call.1} parent=1 // pred_region
      _
    $region13: #{tpu_custom_call.1} parent=1 // pred_fallthru
      _
    %p15 = scmp.eq.s32.totalorder 0, 0
    // Predicated region
    $region14: #{tpu_custom_call.1} parent=1 // pred_check
      %p16 = pneg %p15
    $region15: #{tpu_custom_call.1} parent=1 // pred_check_branch
      %18 = sbr.rel (%p16) target = $region17
    $region16: #{tpu_custom_call.1} parent=1 // pred_region
      %vm19 = vcmask 261120
      %20 = vst.msk [vmem:[#allocation2] sm:$0xff] %vm19, 0.0
      %21 = vst.msk [vmem:[#allocation2 + $0x8] sm:$0xff] %vm19, 0.0
    $region17: #{tpu_custom_call.1} parent=1 // pred_fallthru
      _
    %v22 = vld [vmem:[%s0] sm:$0xff]
    %v23 = vld [vmem:[%s0 + $0x8] sm:$0xff]
    %v24 = vld [vmem:[%s1] sm:$0xff]
    %v25 = vld [vmem:[%s1 + $0x8] sm:$0xff]
    %v26 = vld [vmem:[%s1 + $0x10] sm:$0xff]
    %v27 = vld [vmem:[%s1 + $0x18] sm:$0xff]
    %v28 = vld [vmem:[%s1 + $0x20] sm:$0xff]
    %v29 = vld [vmem:[%s1 + $0x28] sm:$0xff]
    %v30 = vld [vmem:[%s1 + $0x30] sm:$0xff]
    %v31 = vld [vmem:[%s1 + $0x38] sm:$0xff]
    %v32 = vld [vmem:[%s1 + $0x40] sm:$0xff]
    %v33 = vld [vmem:[%s1 + $0x48] sm:$0xff]
    %v34 = vld [vmem:[%s1 + $0x50] sm:$0xff]
    %v35 = vld [vmem:[%s1 + $0x58] sm:$0xff]
    %v36 = vld [vmem:[%s1 + $0x60] sm:$0xff]
    %v37 = vld [vmem:[%s1 + $0x68] sm:$0xff]
    %v38 = vld [vmem:[%s1 + $0x70] sm:$0xff]
    %v39 = vld [vmem:[%s1 + $0x78] sm:$0xff]
    %vm40 = vcmask 261120
    %v42 = vsel %vm40, %v22, 0
    %v45 = vsel %vm40, %v23, 0
    %v48 = vsel %vm40, %v24, 0
    %v51 = vsel %vm40, %v25, 0
    %v54 = vsel %vm40, %v26, 0
    %v57 = vsel %vm40, %v27, 0
    %v60 = vsel %vm40, %v28, 0
    %v63 = vsel %vm40, %v29, 0
    %v66 = vsel %vm40, %v30, 0
    %v69 = vsel %vm40, %v31, 0
    %v72 = vsel %vm40, %v32, 0
    %v75 = vsel %vm40, %v33, 0
    %v78 = vsel %vm40, %v34, 0
    %v81 = vsel %vm40, %v35, 0
    %v84 = vsel %vm40, %v36, 0
    %v87 = vsel %vm40, %v37, 0
    %v90 = vsel %vm40, %v38, 0
    %v93 = vsel %vm40, %v39, 0
    %95 = vmatpush.xpose.msra.mxu0 %v93
    %96 = vmatpush.xpose.msra.mxu0 %v90
    %97 = vmatpush.xpose.msra.mxu0 %v87
    %98 = vmatpush.xpose.msra.mxu0 %v84
    %99 = vmatpush.xpose.msra.mxu0 %v81
    %100 = vmatpush.xpose.msra.mxu0 %v78
    %101 = vmatpush.xpose.msra.mxu0 %v75
    %102 = vmatpush.xpose.msra.mxu0 %v72
    %103 = vmatpush.xpose.msra.mxu0 %v69
    %104 = vmatpush.xpose.msra.mxu0 %v66
    %105 = vmatpush.xpose.msra.mxu0 %v63
    %106 = vmatpush.xpose.msra.mxu0 %v60
    %107 = vmatpush.xpose.msra.mxu0 %v57
    %108 = vmatpush.xpose.msra.mxu0 %v54
    %109 = vmatpush.xpose.msra.mxu0 %v51
    %110 = vmatpush.xpose.msra.mxu0 %v48
    %111 = vmatmul.f32.gmra.mxu0 %v42
    %v112 = vpop.f32.mrf.mxu0
    %v113 = vadd.f32 0.0, %v112
    %114 = vmatmul.f32.gmra.mxu0 %v45
    %v115 = vpop.f32.mrf.mxu0
    %v116 = vadd.f32 0.0, %v115
    %117 = vdwg.mxu0
    %v118 = vmul.f32 %v113, %v113
    %v119 = vmul.f32 %v116, %v116
    %v120 = vmul.f32 %v118, 0.044715
    %v121 = vmul.f32 %v119, 0.044715
    %v122 = vadd.f32 %v120, 1.0
    %v123 = vadd.f32 %v121, 1.0
    %v124 = vmul.f32 %v113, %v122
    %v125 = vmul.f32 %v116, %v123
    %v126 = vmul.f32 %v113, 0.5
    %v127 = vmul.f32 %v116, 0.5
    %v128 = vmul.f32 %v124, 0.7978846
    %v129 = vmul.f32 %v125, 0.7978846
    %v130 = vtanh.pop %v128
    %v131 = vtanh.pop %v129
    %v132 = vadd.f32 %v130, 1.0
    %v133 = vadd.f32 %v131, 1.0
    %v134 = vmul.f32 %v126, %v132
    %v135 = vmul.f32 %v127, %v133
    %v136 = vld [vmem:[#allocation2] sm:$0xff]
    %v137 = vld [vmem:[#allocation2 + $0x8] sm:$0xff]
    %v138 = vld [vmem:[%s2] sm:$0xff]
    %v139 = vld [vmem:[%s2 + $0x8] sm:$0xff]
    %v140 = vld [vmem:[%s2 + $0x10] sm:$0xff]
    %v141 = vld [vmem:[%s2 + $0x18] sm:$0xff]
    %142 = vmatpush.xpose.msra.mxu0 0.0
    %143 = vmatpush.xpose.msra.mxu0 0.0
    %144 = vmatpush.xpose.msra.mxu0 0.0
    %145 = vmatpush.xpose.msra.mxu0 0.0
    %146 = vmatpush.xpose.msra.mxu0 0.0
    %147 = vmatpush.xpose.msra.mxu0 0.0
    %148 = vmatpush.xpose.msra.mxu0 0.0
    %149 = vmatpush.xpose.msra.mxu0 0.0
    %150 = vmatpush.xpose.msra.mxu0 0.0
    %151 = vmatpush.xpose.msra.mxu0 0.0
    %152 = vmatpush.xpose.msra.mxu0 0.0
    %153 = vmatpush.xpose.msra.mxu0 0.0
    %154 = vmatpush.xpose.msra.mxu0 %v141
    %155 = vmatpush.xpose.msra.mxu0 %v140
    %156 = vmatpush.xpose.msra.mxu0 %v139
    %157 = vmatpush.xpose.msra.mxu0 %v138
    %158 = vmatmul.f32.gmra.mxu0 %v134
    %v159 = vpop.f32.mrf.mxu0
    %v160 = vadd.f32 0.0, %v159
    %161 = vmatmul.f32.gmra.mxu0 %v135
    %v162 = vpop.f32.mrf.mxu0
    %v163 = vadd.f32 0.0, %v162
    %164 = vdwg.mxu0
    %v165 = vadd.f32 %v136, %v160
    %v166 = vadd.f32 %v137, %v163
    %167 = vst.msk [vmem:[#allocation2] sm:$0xff] %vm40, %v165
    %168 = vst.msk [vmem:[#allocation2 + $0x8] sm:$0xff] %vm40, %v166
    // Predicated region
    $region18: #{tpu_custom_call.1} parent=1 // pred_check
      %p169 = pneg %p15
    $region19: #{tpu_custom_call.1} parent=1 // pred_check_branch
      %171 = sbr.rel (%p169) target = $region21
    $region20: #{tpu_custom_call.1} parent=1 // pred_region
      %v172 = vld [vmem:[#allocation2] sm:$0xff]
      %v173 = vld [vmem:[#allocation2 + $0x8] sm:$0xff]
      %174 = vst.msk [vmem:[#allocation3] sm:$0xff] %vm40, %v172
      %175 = vst.msk [vmem:[#allocation3 + $0x8] sm:$0xff] %vm40, %v173
    $region21: #{tpu_custom_call.1} parent=1 // pred_fallthru
      _
    // Predicated region
    $region22: #{tpu_custom_call.1} parent=1 // pred_check
      _
    $region23: #{tpu_custom_call.1} parent=1 // pred_check_branch
      %177 = sbr.rel (0) target = $region25
    $region24: #{tpu_custom_call.1} parent=1 // pred_region
      %179 = vsyncadd [#allocation4], 0
      %s180 = sshll.u32 [#allocation3], 4
      %s181 = int_to_ptr.vmem [resolvable:$true] %s180
      %s182 = sshll.u32 %s3, 4
      %s183 = int_to_ptr.hbm [resolvable:$true] %s182
      %188 = dma.vmem_to_hbm [thread:$0]  %s181, 256, %s183, [#allocation4], 128, 128, 8
    $region25: #{tpu_custom_call.1} parent=1 // pred_fallthru
      _
    // Predicated region
    $region26: #{tpu_custom_call.1} parent=1 // pred_check
      _
    $region27: #{tpu_custom_call.1} parent=1 // pred_check_branch
      %190 = sbr.rel (0) target = $region29
    $region28: #{tpu_custom_call.1} parent=1 // pred_region
      %192 = dma.done [#allocation4], 256
    $region29: #{tpu_custom_call.1} parent=1 // pred_fallthru
      _
    %193 = vsyncpa [#allocation4], 1

</llo_original>
